<compile_context>
chip_gen: v7x
topology: tpu7x:2x2x1
jax: 0.10.0
libtpu: 0.0.40
codegen_flags: <defaults>
</compile_context>

<pallas_src>
import functools

import jax
import jax.numpy as jnp
from jax import lax
from jax.experimental import pallas as pl
from jax.experimental.pallas import tpu as pltpu


# ----------------------------------------------------------------------------
# Pallas kernel
# ----------------------------------------------------------------------------
def ran_kernel(x_ref, w_ref, b_ref, embt_ref, bias_ref,
               ids_ref, lbl_ref, pv_ref, slab_ref, *, num_labels):
    tn = x_ref.shape[0]
    vp = embt_ref.shape[1]          # lane-padded rule-vocab size
    sw = slab_ref.shape[1]          # lane-dense slab width (>= num_labels + R)
    R = ids_ref.shape[1]

    # dense: Linear(E, 128) + ReLU (dropout == identity at inference) -- MXU
    x = x_ref[...]                                           # (TN, E)
    h = jnp.dot(x, w_ref[...], preferred_element_type=jnp.float32) + b_ref[...]
    h = jnp.maximum(h, 0.0)                                  # (TN, H)

    # attention scores against the WHOLE rule table in one MXU matmul,
    # bias folded in as a broadcast row.  (padded columns are all-zero)
    scores_all = (jnp.dot(h, embt_ref[...], preferred_element_type=jnp.float32)
                  + bias_ref[...])                           # (TN, Vp)

    ids = ids_ref[...]                                       # (TN, R) int32
    lbls = lbl_ref[...]                                      # (TN, R) int32
    pvs = pv_ref[...]                                        # (TN, R) f32

    # broadcast iotas hoisted out of the rule loop (JAX doesn't CSE them)
    vlane = lax.broadcasted_iota(jnp.int32, (tn, vp), 1)     # rule-vocab lanes
    slane = lax.broadcasted_iota(jnp.int32, (tn, sw), 1)     # output-slab lanes

    out_p = jnp.zeros((tn, sw), jnp.float32)                 # labels in cols [0, L)
    att_p = jnp.zeros((tn, sw), jnp.float32)                 # att in cols [L, L+R)
    num_rules = jnp.zeros((tn, 1), jnp.float32)
    sum_masked = jnp.zeros((tn, 1), jnp.float32)

    for r in range(R):                                       # R is small & static
        id_r = ids[:, r:r + 1]                               # (TN, 1)
        # select this row's score for rule id_r (per-row dynamic lane pick)
        score_r = jnp.sum(jnp.where(vlane == id_r, scores_all, 0.0),
                          axis=1, keepdims=True)             # (TN, 1)
        att_r = jax.nn.sigmoid(score_r)                      # (TN, 1)  (EUP)

        lbl_r = lbls[:, r:r + 1]                             # (TN, 1)
        pv_r = pvs[:, r:r + 1]                               # (TN, 1)
        mask_r = (pv_r > 0.0).astype(jnp.float32)            # (TN, 1)

        # weighted one-hot contribution: att * pred_value at lane == label
        out_p = out_p + (att_r * pv_r) * (slane == lbl_r).astype(jnp.float32)
        # attention prob placed at static slab column (num_labels + r)
        att_p = att_p + att_r * (slane == (num_labels + r)).astype(jnp.float32)
        num_rules = num_rules + pv_r
        sum_masked = sum_masked + att_r * mask_r

    # normalize_with_random_rule (uniform-rule correction on label columns only)
    label_mask = (slane < num_labels).astype(jnp.float32)    # (TN, SW)
    uniform_pred = (num_rules - sum_masked) * (1.0 / num_labels)
    out_p = out_p + uniform_pred * label_mask

    # l1_normalize (EUP reciprocal; label columns only, rest of slab stays 0)
    out_p = out_p + 1e-5 * label_mask
    denom = jnp.sum(out_p, axis=1, keepdims=True)
    out_p = out_p * pl.reciprocal(denom, approx=True)

    slab_ref[...] = out_p + att_p                            # single lane-dense store


# ----------------------------------------------------------------------------
# Wrapper: layout/compression glue in plain JAX, hot path in Pallas
# ----------------------------------------------------------------------------
def rule_attention_forward(student_embeddings, rule_ids, rule_preds_onehot,
                           params, *, tile_n=256):
    B, S, E = student_embeddings.shape
    R = rule_ids.shape[-1]
    L = rule_preds_onehot.shape[-1]
    V, H = params["rule_embed"].shape           # V = num_rules + 1
    N = B * S

    # Clamp the row tile so small problems are not padded to 256 rows; the
    # second-to-last block dim only needs to be a multiple of 8.
    tile_n = min(tile_n, max(8, pl.cdiv(N, 8) * 8))
    n_pad = pl.cdiv(N, tile_n) * tile_n
    Vp = pl.cdiv(V, 128) * 128                  # lane-pad rule vocab
    SW = max(128, pl.cdiv(L + R, 128) * 128)    # lane-dense output slab width

    # flatten rows
    x = student_embeddings.reshape(N, E).astype(jnp.float32)
    ids = rule_ids.reshape(N, R).astype(jnp.int32)
    onehot = rule_preds_onehot.reshape(N, R, L).astype(jnp.float32)
    # compress the (N, R, L) one-hot stream: label index + per-rule value
    # (exact when each rule row has at most one non-zero entry, i.e. a one-hot)
    labels = jnp.argmax(onehot, axis=-1).astype(jnp.int32)   # (N, R)
    pred_val = jnp.sum(onehot, axis=-1)                      # (N, R)

    pad = n_pad - N
    if pad:
        x = jnp.pad(x, ((0, pad), (0, 0)))
        ids = jnp.pad(ids, ((0, pad), (0, 0)))
        labels = jnp.pad(labels, ((0, pad), (0, 0)))
        pred_val = jnp.pad(pred_val, ((0, pad), (0, 0)))

    # small replicated parameter tiles
    w_dense = params["w_dense"].astype(jnp.float32)                    # (E, H)
    b_dense = params["b_dense"].reshape(1, H).astype(jnp.float32)      # (1, H)
    embt = jnp.pad(params["rule_embed"].astype(jnp.float32).T,         # (H, Vp)
                   ((0, 0), (0, Vp - V)))
    bias_row = jnp.pad(params["rule_bias"].reshape(1, V).astype(jnp.float32),
                       ((0, 0), (0, Vp - V)))                          # (1, Vp)

    grid = (n_pad // tile_n,)
    kernel = functools.partial(ran_kernel, num_labels=L)

    slab = pl.pallas_call(
        kernel,
        out_shape=jax.ShapeDtypeStruct((n_pad, SW), jnp.float32),
        grid=grid,
        in_specs=[
            pl.BlockSpec((tile_n, E), lambda i: (i, 0)),     # x rows
            pl.BlockSpec((E, H), lambda i: (0, 0)),          # W (replicated)
            pl.BlockSpec((1, H), lambda i: (0, 0)),          # b (replicated)
            pl.BlockSpec((H, Vp), lambda i: (0, 0)),         # rule_embed.T (replicated)
            pl.BlockSpec((1, Vp), lambda i: (0, 0)),         # rule_bias row (replicated)
            pl.BlockSpec((tile_n, R), lambda i: (i, 0)),     # rule ids
            pl.BlockSpec((tile_n, R), lambda i: (i, 0)),     # label idx
            pl.BlockSpec((tile_n, R), lambda i: (i, 0)),     # pred value / mask
        ],
        out_specs=pl.BlockSpec((tile_n, SW), lambda i: (i, 0)),
        compiler_params=pltpu.CompilerParams(
            dimension_semantics=("parallel",)),
    )(x, w_dense, b_dense, embt, bias_row, ids, labels, pred_val)

    outputs = slab[:N, :L].reshape(B, S, L)
    att = slab[:N, L:L + R].reshape(B, S, R)
    return outputs, att


# ----------------------------------------------------------------------------
# Pure-JAX reference (mirrors the PyTorch forward) for a sanity check
# ----------------------------------------------------------------------------
def reference_forward(student_embeddings, rule_ids, rule_preds_onehot, params):
    L = rule_preds_onehot.shape[-1]
    x = student_embeddings.astype(jnp.float32)
    h = jnp.maximum(
        jnp.dot(x, params["w_dense"], precision=lax.Precision.HIGHEST)
        + params["b_dense"], 0.0)
    remb = params["rule_embed"][rule_ids]
    rbias = params["rule_bias"][rule_ids][..., 0]
    scores = jnp.einsum("bsh,bsrh->bsr", h, remb,
                        precision=lax.Precision.HIGHEST) + rbias
    att = jax.nn.sigmoid(scores)
    onehot = rule_preds_onehot.astype(jnp.float32)
    out = jnp.einsum("bsr,bsrl->bsl", att, onehot,
                     precision=lax.Precision.HIGHEST)
    sum_prob = jnp.sum(onehot, axis=-1)
    rule_mask = (sum_prob > 0).astype(jnp.float32)
    num_rules = jnp.sum(sum_prob, axis=-1)
    sum_masked = jnp.sum(att * rule_mask, axis=-1)
    out = out + ((num_rules - sum_masked) / L)[..., None]
    out = out + 1e-5
    out = out / jnp.sum(out, axis=-1, keepdims=True)
    return out, att


# ----------------------------------------------------------------------------
# Deterministic parameter init (shapes from RuleAttentionNetwork.__init__)
# ----------------------------------------------------------------------------
def init_params(key, student_emb_dim, num_rules, hidden=128):
    k1, k2, k3, k4 = jax.random.split(key, 4)
    bound = 1.0 / jnp.sqrt(student_emb_dim)
    w_dense = jax.random.uniform(k1, (student_emb_dim, hidden),
                                 minval=-bound, maxval=bound, dtype=jnp.float32)
    b_dense = jax.random.uniform(k2, (hidden,),
                                 minval=-bound, maxval=bound, dtype=jnp.float32)
    # xavier uniform for rule embeddings, row 0 zeroed (padding_idx=0)
    xb = jnp.sqrt(6.0 / (num_rules + 1 + hidden))
    rule_embed = jax.random.uniform(k3, (num_rules + 1, hidden),
                                    minval=-xb, maxval=xb, dtype=jnp.float32)
    rule_embed = rule_embed.at[0].set(0.0)
    rule_bias = jax.random.uniform(k4, (num_rules + 1, 1),
                                   minval=0.0, maxval=1.0, dtype=jnp.float32)
    rule_bias = rule_bias.at[0].set(0.0)
    return {"w_dense": w_dense, "b_dense": b_dense,
            "rule_embed": rule_embed, "rule_bias": rule_bias}


if __name__ == "__main__":
    B, S, E = 2, 8, 32          # batch, sequence, student_emb_dim
    NUM_RULES = 6               # vocabulary of rules (0 is padding)
    R = 4                       # rules attached per token
    L = 3                       # num_labels

    key = jax.random.PRNGKey(0)
    kx, kid, klab, kp = jax.random.split(key, 4)

    student_embeddings = jax.random.normal(kx, (B, S, E), dtype=jnp.float32)
    rule_ids = jax.random.randint(kid, (B, S, R), 0, NUM_RULES + 1)  # 0 = padding
    labels = jax.random.randint(klab, (B, S, R), 0, L)
    rule_preds_onehot = (jax.nn.one_hot(labels, L, dtype=jnp.float32)
                         * (rule_ids > 0).astype(jnp.float32)[..., None])

    params = init_params(kp, E, NUM_RULES)

    outputs, att = rule_attention_forward(
        student_embeddings, rule_ids, rule_preds_onehot, params, tile_n=256)
    outputs = jax.block_until_ready(outputs)
    att = jax.block_until_ready(att)

    ref_out, ref_att = reference_forward(
        student_embeddings, rule_ids, rule_preds_onehot, params)

    # tolerance covers the EUP approx-reciprocal in the final L1 normalize
    assert outputs.shape == (B, S, L) and att.shape == (B, S, R)
    assert jnp.allclose(att, ref_att, atol=2e-3, rtol=2e-3)
    assert jnp.allclose(outputs, ref_out, atol=2e-3, rtol=2e-3)

    print("KERNEL_OK")
</pallas_src>

<mosaic_0001>
module attributes {stable_mosaic.version = 11 : i64} {
  func.func @ran_kernel(%arg0: i32, %arg1: memref<16x32xf32, #tpu.memory_space<vmem>>, %arg2: memref<32x128xf32, #tpu.memory_space<vmem>>, %arg3: memref<1x128xf32, #tpu.memory_space<vmem>>, %arg4: memref<128x128xf32, #tpu.memory_space<vmem>>, %arg5: memref<1x128xf32, #tpu.memory_space<vmem>>, %arg6: memref<16x4xi32, #tpu.memory_space<vmem>>, %arg7: memref<16x4xi32, #tpu.memory_space<vmem>>, %arg8: memref<16x4xf32, #tpu.memory_space<vmem>>, %arg9: memref<16x128xf32, #tpu.memory_space<vmem>>) attributes {dimension_semantics = [#tpu.dimension_semantics<parallel>], iteration_bounds = array<i64: 1>, scalar_prefetch = 0 : i64, scratch_operands = 0 : i64, tpu.core_type = #tpu.core_type<tc>, window_params = [{transform_indices = @transform_0, window_bounds = array<i64: 16, 32>}, {pipeline_mode = #tpu.pipeline_mode<synchronous>, transform_indices = @transform_1, window_bounds = array<i64: 32, 128>}, {pipeline_mode = #tpu.pipeline_mode<synchronous>, transform_indices = @transform_2, window_bounds = array<i64: 1, 128>}, {pipeline_mode = #tpu.pipeline_mode<synchronous>, transform_indices = @transform_3, window_bounds = array<i64: 128, 128>}, {pipeline_mode = #tpu.pipeline_mode<synchronous>, transform_indices = @transform_4, window_bounds = array<i64: 1, 128>}, {transform_indices = @transform_5, window_bounds = array<i64: 16, 4>}, {transform_indices = @transform_6, window_bounds = array<i64: 16, 4>}, {transform_indices = @transform_7, window_bounds = array<i64: 16, 4>}, {transform_indices = @transform_8, window_bounds = array<i64: 16, 128>}]} {
    %c0 = arith.constant 0 : index
    %c0_0 = arith.constant 0 : index
    %0 = vector.load %arg1[%c0, %c0_0] : memref<16x32xf32, #tpu.memory_space<vmem>>, vector<16x32xf32>
    %c0_1 = arith.constant 0 : index
    %c0_2 = arith.constant 0 : index
    %1 = vector.load %arg2[%c0_1, %c0_2] : memref<32x128xf32, #tpu.memory_space<vmem>>, vector<32x128xf32>
    %cst = arith.constant dense<0.000000e+00> : vector<16x128xf32>
    %2 = tpu.matmul %0, %1, %cst {dimension_numbers = #tpu.dot_dimension_numbers<[1], [0], [0], [1], [0, 0, 1, 1], [], []>} : vector<16x32xf32>, vector<32x128xf32>, vector<16x128xf32> -> vector<16x128xf32>
    %c0_3 = arith.constant 0 : index
    %c0_4 = arith.constant 0 : index
    %3 = vector.load %arg3[%c0_3, %c0_4] : memref<1x128xf32, #tpu.memory_space<vmem>>, vector<1x128xf32>
    %4 = vector.broadcast %3 : vector<1x128xf32> to vector<16x128xf32>
    %5 = arith.addf %2, %4 : vector<16x128xf32>
    %cst_5 = arith.constant 0.000000e+00 : f32
    %6 = vector.broadcast %cst_5 : f32 to vector<16x128xf32>
    %7 = arith.maximumf %5, %6 : vector<16x128xf32>
    %c0_6 = arith.constant 0 : index
    %c0_7 = arith.constant 0 : index
    %8 = vector.load %arg4[%c0_6, %c0_7] : memref<128x128xf32, #tpu.memory_space<vmem>>, vector<128x128xf32>
    %cst_8 = arith.constant dense<0.000000e+00> : vector<16x128xf32>
    %9 = tpu.matmul %7, %8, %cst_8 {dimension_numbers = #tpu.dot_dimension_numbers<[1], [0], [0], [1], [0, 0, 1, 1], [], []>} : vector<16x128xf32>, vector<128x128xf32>, vector<16x128xf32> -> vector<16x128xf32>
    %c0_9 = arith.constant 0 : index
    %c0_10 = arith.constant 0 : index
    %10 = vector.load %arg5[%c0_9, %c0_10] : memref<1x128xf32, #tpu.memory_space<vmem>>, vector<1x128xf32>
    %11 = vector.broadcast %10 : vector<1x128xf32> to vector<16x128xf32>
    %12 = arith.addf %9, %11 : vector<16x128xf32>
    %c0_11 = arith.constant 0 : index
    %c0_12 = arith.constant 0 : index
    %13 = vector.load %arg6[%c0_11, %c0_12] : memref<16x4xi32, #tpu.memory_space<vmem>>, vector<16x4xi32>
    %c0_13 = arith.constant 0 : index
    %c0_14 = arith.constant 0 : index
    %14 = vector.load %arg7[%c0_13, %c0_14] : memref<16x4xi32, #tpu.memory_space<vmem>>, vector<16x4xi32>
    %c0_15 = arith.constant 0 : index
    %c0_16 = arith.constant 0 : index
    %15 = vector.load %arg8[%c0_15, %c0_16] : memref<16x4xf32, #tpu.memory_space<vmem>>, vector<16x4xf32>
    %16 = tpu.iota {dimensions = array<i32: 1>} : vector<16x128xi32>
    %17 = tpu.iota {dimensions = array<i32: 1>} : vector<16x128xi32>
    %cst_17 = arith.constant 0.000000e+00 : f32
    %18 = vector.broadcast %cst_17 : f32 to vector<16x128xf32>
    %cst_18 = arith.constant 0.000000e+00 : f32
    %19 = vector.broadcast %cst_18 : f32 to vector<16x128xf32>
    %cst_19 = arith.constant 0.000000e+00 : f32
    %20 = vector.broadcast %cst_19 : f32 to vector<16x1xf32>
    %cst_20 = arith.constant 0.000000e+00 : f32
    %21 = vector.broadcast %cst_20 : f32 to vector<16x1xf32>
    %22 = vector.extract_strided_slice %13 {offsets = [0, 0], sizes = [16, 1], strides = [1, 1]} : vector<16x4xi32> to vector<16x1xi32>
    %23 = vector.broadcast %22 : vector<16x1xi32> to vector<16x128xi32>
    %24 = arith.cmpi eq, %16, %23 : vector<16x128xi32>
    %cst_21 = arith.constant 0.000000e+00 : f32
    %25 = vector.broadcast %cst_21 : f32 to vector<16x128xf32>
    %26 = arith.select %24, %12, %25 : vector<16x128xi1>, vector<16x128xf32>
    %cst_22 = arith.constant dense<0.000000e+00> : vector<16xf32>
    %27 = vector.multi_reduction <add>, %26, %cst_22 [1] : vector<16x128xf32> to vector<16xf32>
    %28 = vector.shape_cast %27 : vector<16xf32> to vector<16x1xf32>
    %29 = arith.negf %28 : vector<16x1xf32>
    %30 = math.exp %29 : vector<16x1xf32>
    %cst_23 = arith.constant 1.000000e+00 : f32
    %31 = vector.broadcast %cst_23 : f32 to vector<16x1xf32>
    %32 = arith.addf %31, %30 : vector<16x1xf32>
    %33 = arith.divf %31, %32 : vector<16x1xf32>
    %34 = vector.extract_strided_slice %14 {offsets = [0, 0], sizes = [16, 1], strides = [1, 1]} : vector<16x4xi32> to vector<16x1xi32>
    %35 = vector.extract_strided_slice %15 {offsets = [0, 0], sizes = [16, 1], strides = [1, 1]} : vector<16x4xf32> to vector<16x1xf32>
    %cst_24 = arith.constant 0.000000e+00 : f32
    %36 = vector.broadcast %cst_24 : f32 to vector<16x1xf32>
    %37 = arith.cmpf ogt, %35, %36 : vector<16x1xf32>
    %38 = arith.extui %37 : vector<16x1xi1> to vector<16x1xi32>
    %39 = arith.sitofp %38 : vector<16x1xi32> to vector<16x1xf32>
    %40 = arith.mulf %33, %35 : vector<16x1xf32>
    %41 = vector.broadcast %34 : vector<16x1xi32> to vector<16x128xi32>
    %42 = arith.cmpi eq, %17, %41 : vector<16x128xi32>
    %43 = arith.extui %42 : vector<16x128xi1> to vector<16x128xi32>
    %44 = arith.sitofp %43 : vector<16x128xi32> to vector<16x128xf32>
    %45 = vector.broadcast %40 : vector<16x1xf32> to vector<16x128xf32>
    %46 = arith.mulf %45, %44 : vector<16x128xf32>
    %47 = arith.addf %18, %46 : vector<16x128xf32>
    %c3_i32 = arith.constant 3 : i32
    %48 = vector.broadcast %c3_i32 : i32 to vector<16x128xi32>
    %49 = arith.cmpi eq, %17, %48 : vector<16x128xi32>
    %50 = arith.extui %49 : vector<16x128xi1> to vector<16x128xi32>
    %51 = arith.sitofp %50 : vector<16x128xi32> to vector<16x128xf32>
    %52 = vector.broadcast %33 : vector<16x1xf32> to vector<16x128xf32>
    %53 = arith.mulf %52, %51 : vector<16x128xf32>
    %54 = arith.addf %19, %53 : vector<16x128xf32>
    %55 = arith.addf %20, %35 : vector<16x1xf32>
    %56 = arith.mulf %33, %39 : vector<16x1xf32>
    %57 = arith.addf %21, %56 : vector<16x1xf32>
    %58 = vector.extract_strided_slice %13 {offsets = [0, 1], sizes = [16, 1], strides = [1, 1]} : vector<16x4xi32> to vector<16x1xi32>
    %59 = vector.broadcast %58 : vector<16x1xi32> to vector<16x128xi32>
    %60 = arith.cmpi eq, %16, %59 : vector<16x128xi32>
    %cst_25 = arith.constant 0.000000e+00 : f32
    %61 = vector.broadcast %cst_25 : f32 to vector<16x128xf32>
    %62 = arith.select %60, %12, %61 : vector<16x128xi1>, vector<16x128xf32>
    %cst_26 = arith.constant dense<0.000000e+00> : vector<16xf32>
    %63 = vector.multi_reduction <add>, %62, %cst_26 [1] : vector<16x128xf32> to vector<16xf32>
    %64 = vector.shape_cast %63 : vector<16xf32> to vector<16x1xf32>
    %65 = arith.negf %64 : vector<16x1xf32>
    %66 = math.exp %65 : vector<16x1xf32>
    %cst_27 = arith.constant 1.000000e+00 : f32
    %67 = vector.broadcast %cst_27 : f32 to vector<16x1xf32>
    %68 = arith.addf %67, %66 : vector<16x1xf32>
    %69 = arith.divf %67, %68 : vector<16x1xf32>
    %70 = vector.extract_strided_slice %14 {offsets = [0, 1], sizes = [16, 1], strides = [1, 1]} : vector<16x4xi32> to vector<16x1xi32>
    %71 = vector.extract_strided_slice %15 {offsets = [0, 1], sizes = [16, 1], strides = [1, 1]} : vector<16x4xf32> to vector<16x1xf32>
    %cst_28 = arith.constant 0.000000e+00 : f32
    %72 = vector.broadcast %cst_28 : f32 to vector<16x1xf32>
    %73 = arith.cmpf ogt, %71, %72 : vector<16x1xf32>
    %74 = arith.extui %73 : vector<16x1xi1> to vector<16x1xi32>
    %75 = arith.sitofp %74 : vector<16x1xi32> to vector<16x1xf32>
    %76 = arith.mulf %69, %71 : vector<16x1xf32>
    %77 = vector.broadcast %70 : vector<16x1xi32> to vector<16x128xi32>
    %78 = arith.cmpi eq, %17, %77 : vector<16x128xi32>
    %79 = arith.extui %78 : vector<16x128xi1> to vector<16x128xi32>
    %80 = arith.sitofp %79 : vector<16x128xi32> to vector<16x128xf32>
    %81 = vector.broadcast %76 : vector<16x1xf32> to vector<16x128xf32>
    %82 = arith.mulf %81, %80 : vector<16x128xf32>
    %83 = arith.addf %47, %82 : vector<16x128xf32>
    %c4_i32 = arith.constant 4 : i32
    %84 = vector.broadcast %c4_i32 : i32 to vector<16x128xi32>
    %85 = arith.cmpi eq, %17, %84 : vector<16x128xi32>
    %86 = arith.extui %85 : vector<16x128xi1> to vector<16x128xi32>
    %87 = arith.sitofp %86 : vector<16x128xi32> to vector<16x128xf32>
    %88 = vector.broadcast %69 : vector<16x1xf32> to vector<16x128xf32>
    %89 = arith.mulf %88, %87 : vector<16x128xf32>
    %90 = arith.addf %54, %89 : vector<16x128xf32>
    %91 = arith.addf %55, %71 : vector<16x1xf32>
    %92 = arith.mulf %69, %75 : vector<16x1xf32>
    %93 = arith.addf %57, %92 : vector<16x1xf32>
    %94 = vector.extract_strided_slice %13 {offsets = [0, 2], sizes = [16, 1], strides = [1, 1]} : vector<16x4xi32> to vector<16x1xi32>
    %95 = vector.broadcast %94 : vector<16x1xi32> to vector<16x128xi32>
    %96 = arith.cmpi eq, %16, %95 : vector<16x128xi32>
    %cst_29 = arith.constant 0.000000e+00 : f32
    %97 = vector.broadcast %cst_29 : f32 to vector<16x128xf32>
    %98 = arith.select %96, %12, %97 : vector<16x128xi1>, vector<16x128xf32>
    %cst_30 = arith.constant dense<0.000000e+00> : vector<16xf32>
    %99 = vector.multi_reduction <add>, %98, %cst_30 [1] : vector<16x128xf32> to vector<16xf32>
    %100 = vector.shape_cast %99 : vector<16xf32> to vector<16x1xf32>
    %101 = arith.negf %100 : vector<16x1xf32>
    %102 = math.exp %101 : vector<16x1xf32>
    %cst_31 = arith.constant 1.000000e+00 : f32
    %103 = vector.broadcast %cst_31 : f32 to vector<16x1xf32>
    %104 = arith.addf %103, %102 : vector<16x1xf32>
    %105 = arith.divf %103, %104 : vector<16x1xf32>
    %106 = vector.extract_strided_slice %14 {offsets = [0, 2], sizes = [16, 1], strides = [1, 1]} : vector<16x4xi32> to vector<16x1xi32>
    %107 = vector.extract_strided_slice %15 {offsets = [0, 2], sizes = [16, 1], strides = [1, 1]} : vector<16x4xf32> to vector<16x1xf32>
    %cst_32 = arith.constant 0.000000e+00 : f32
    %108 = vector.broadcast %cst_32 : f32 to vector<16x1xf32>
    %109 = arith.cmpf ogt, %107, %108 : vector<16x1xf32>
    %110 = arith.extui %109 : vector<16x1xi1> to vector<16x1xi32>
    %111 = arith.sitofp %110 : vector<16x1xi32> to vector<16x1xf32>
    %112 = arith.mulf %105, %107 : vector<16x1xf32>
    %113 = vector.broadcast %106 : vector<16x1xi32> to vector<16x128xi32>
    %114 = arith.cmpi eq, %17, %113 : vector<16x128xi32>
    %115 = arith.extui %114 : vector<16x128xi1> to vector<16x128xi32>
    %116 = arith.sitofp %115 : vector<16x128xi32> to vector<16x128xf32>
    %117 = vector.broadcast %112 : vector<16x1xf32> to vector<16x128xf32>
    %118 = arith.mulf %117, %116 : vector<16x128xf32>
    %119 = arith.addf %83, %118 : vector<16x128xf32>
    %c5_i32 = arith.constant 5 : i32
    %120 = vector.broadcast %c5_i32 : i32 to vector<16x128xi32>
    %121 = arith.cmpi eq, %17, %120 : vector<16x128xi32>
    %122 = arith.extui %121 : vector<16x128xi1> to vector<16x128xi32>
    %123 = arith.sitofp %122 : vector<16x128xi32> to vector<16x128xf32>
    %124 = vector.broadcast %105 : vector<16x1xf32> to vector<16x128xf32>
    %125 = arith.mulf %124, %123 : vector<16x128xf32>
    %126 = arith.addf %90, %125 : vector<16x128xf32>
    %127 = arith.addf %91, %107 : vector<16x1xf32>
    %128 = arith.mulf %105, %111 : vector<16x1xf32>
    %129 = arith.addf %93, %128 : vector<16x1xf32>
    %130 = vector.extract_strided_slice %13 {offsets = [0, 3], sizes = [16, 1], strides = [1, 1]} : vector<16x4xi32> to vector<16x1xi32>
    %131 = vector.broadcast %130 : vector<16x1xi32> to vector<16x128xi32>
    %132 = arith.cmpi eq, %16, %131 : vector<16x128xi32>
    %cst_33 = arith.constant 0.000000e+00 : f32
    %133 = vector.broadcast %cst_33 : f32 to vector<16x128xf32>
    %134 = arith.select %132, %12, %133 : vector<16x128xi1>, vector<16x128xf32>
    %cst_34 = arith.constant dense<0.000000e+00> : vector<16xf32>
    %135 = vector.multi_reduction <add>, %134, %cst_34 [1] : vector<16x128xf32> to vector<16xf32>
    %136 = vector.shape_cast %135 : vector<16xf32> to vector<16x1xf32>
    %137 = arith.negf %136 : vector<16x1xf32>
    %138 = math.exp %137 : vector<16x1xf32>
    %cst_35 = arith.constant 1.000000e+00 : f32
    %139 = vector.broadcast %cst_35 : f32 to vector<16x1xf32>
    %140 = arith.addf %139, %138 : vector<16x1xf32>
    %141 = arith.divf %139, %140 : vector<16x1xf32>
    %142 = vector.extract_strided_slice %14 {offsets = [0, 3], sizes = [16, 1], strides = [1, 1]} : vector<16x4xi32> to vector<16x1xi32>
    %143 = vector.extract_strided_slice %15 {offsets = [0, 3], sizes = [16, 1], strides = [1, 1]} : vector<16x4xf32> to vector<16x1xf32>
    %cst_36 = arith.constant 0.000000e+00 : f32
    %144 = vector.broadcast %cst_36 : f32 to vector<16x1xf32>
    %145 = arith.cmpf ogt, %143, %144 : vector<16x1xf32>
    %146 = arith.extui %145 : vector<16x1xi1> to vector<16x1xi32>
    %147 = arith.sitofp %146 : vector<16x1xi32> to vector<16x1xf32>
    %148 = arith.mulf %141, %143 : vector<16x1xf32>
    %149 = vector.broadcast %142 : vector<16x1xi32> to vector<16x128xi32>
    %150 = arith.cmpi eq, %17, %149 : vector<16x128xi32>
    %151 = arith.extui %150 : vector<16x128xi1> to vector<16x128xi32>
    %152 = arith.sitofp %151 : vector<16x128xi32> to vector<16x128xf32>
    %153 = vector.broadcast %148 : vector<16x1xf32> to vector<16x128xf32>
    %154 = arith.mulf %153, %152 : vector<16x128xf32>
    %155 = arith.addf %119, %154 : vector<16x128xf32>
    %c6_i32 = arith.constant 6 : i32
    %156 = vector.broadcast %c6_i32 : i32 to vector<16x128xi32>
    %157 = arith.cmpi eq, %17, %156 : vector<16x128xi32>
    %158 = arith.extui %157 : vector<16x128xi1> to vector<16x128xi32>
    %159 = arith.sitofp %158 : vector<16x128xi32> to vector<16x128xf32>
    %160 = vector.broadcast %141 : vector<16x1xf32> to vector<16x128xf32>
    %161 = arith.mulf %160, %159 : vector<16x128xf32>
    %162 = arith.addf %126, %161 : vector<16x128xf32>
    %163 = arith.addf %127, %143 : vector<16x1xf32>
    %164 = arith.mulf %141, %147 : vector<16x1xf32>
    %165 = arith.addf %129, %164 : vector<16x1xf32>
    %c3_i32_37 = arith.constant 3 : i32
    %166 = vector.broadcast %c3_i32_37 : i32 to vector<16x128xi32>
    %167 = arith.cmpi slt, %17, %166 : vector<16x128xi32>
    %168 = arith.extui %167 : vector<16x128xi1> to vector<16x128xi32>
    %169 = arith.sitofp %168 : vector<16x128xi32> to vector<16x128xf32>
    %170 = arith.subf %163, %165 : vector<16x1xf32>
    %cst_38 = arith.constant 0.333333343 : f32
    %171 = vector.broadcast %cst_38 : f32 to vector<16x1xf32>
    %172 = arith.mulf %170, %171 : vector<16x1xf32>
    %173 = vector.broadcast %172 : vector<16x1xf32> to vector<16x128xf32>
    %174 = arith.mulf %173, %169 : vector<16x128xf32>
    %175 = arith.addf %155, %174 : vector<16x128xf32>
    %cst_39 = arith.constant 9.99999974E-6 : f32
    %176 = vector.broadcast %cst_39 : f32 to vector<16x128xf32>
    %177 = arith.mulf %176, %169 : vector<16x128xf32>
    %178 = arith.addf %175, %177 : vector<16x128xf32>
    %cst_40 = arith.constant dense<0.000000e+00> : vector<16xf32>
    %179 = vector.multi_reduction <add>, %178, %cst_40 [1] : vector<16x128xf32> to vector<16xf32>
    %180 = vector.shape_cast %179 : vector<16xf32> to vector<16x1xf32>
    %181 = tpu.reciprocal %180 {approx = true} : vector<16x1xf32> -> vector<16x1xf32>
    %182 = vector.broadcast %181 : vector<16x1xf32> to vector<16x128xf32>
    %183 = arith.mulf %178, %182 : vector<16x128xf32>
    %184 = arith.addf %183, %162 : vector<16x128xf32>
    %c0_41 = arith.constant 0 : index
    %c0_42 = arith.constant 0 : index
    %185 = vector.load %arg9[%c0_41, %c0_42] : memref<16x128xf32, #tpu.memory_space<vmem>>, vector<16x128xf32>
    tpu.vector_store %arg9[%c0_41, %c0_42], %184 {strides = array<i32>} : memref<16x128xf32, #tpu.memory_space<vmem>>, vector<16x128xf32>,
    return
  }
  func.func @transform_0(%arg0: i32) -> (i32, i32) {
    %c0_i32 = arith.constant 0 : i32
    %c0_i32_0 = arith.constant 0 : i32
    return %arg0, %c0_i32 : i32, i32
  }
  func.func @transform_1(%arg0: i32) -> (i32, i32) {
    %c0_i32 = arith.constant 0 : i32
    %c0_i32_0 = arith.constant 0 : i32
    %c0_i32_1 = arith.constant 0 : i32
    return %c0_i32, %c0_i32_0 : i32, i32
  }
  func.func @transform_2(%arg0: i32) -> (i32, i32) {
    %c0_i32 = arith.constant 0 : i32
    %c0_i32_0 = arith.constant 0 : i32
    %c0_i32_1 = arith.constant 0 : i32
    return %c0_i32, %c0_i32_0 : i32, i32
  }
  func.func @transform_3(%arg0: i32) -> (i32, i32) {
    %c0_i32 = arith.constant 0 : i32
    %c0_i32_0 = arith.constant 0 : i32
    %c0_i32_1 = arith.constant 0 : i32
    return %c0_i32, %c0_i32_0 : i32, i32
  }
  func.func @transform_4(%arg0: i32) -> (i32, i32) {
    %c0_i32 = arith.constant 0 : i32
    %c0_i32_0 = arith.constant 0 : i32
    %c0_i32_1 = arith.constant 0 : i32
    return %c0_i32, %c0_i32_0 : i32, i32
  }
  func.func @transform_5(%arg0: i32) -> (i32, i32) {
    %c0_i32 = arith.constant 0 : i32
    %c0_i32_0 = arith.constant 0 : i32
    return %arg0, %c0_i32 : i32, i32
  }
  func.func @transform_6(%arg0: i32) -> (i32, i32) {
    %c0_i32 = arith.constant 0 : i32
    %c0_i32_0 = arith.constant 0 : i32
    return %arg0, %c0_i32 : i32, i32
  }
  func.func @transform_7(%arg0: i32) -> (i32, i32) {
    %c0_i32 = arith.constant 0 : i32
    %c0_i32_0 = arith.constant 0 : i32
    return %arg0, %c0_i32 : i32, i32
  }
  func.func @transform_8(%arg0: i32) -> (i32, i32) {
    %c0_i32 = arith.constant 0 : i32
    %c0_i32_0 = arith.constant 0 : i32
    return %arg0, %c0_i32 : i32, i32
  }
}

</mosaic_0001>

<llo_original>
// kernel: tpu_custom_call.1
$region0: #{tpu_custom_call.1}
  #allocation0 [shape = 'u32[]', space=smem, size = 0x4, offset = 0x4, fixed_abs, tag = 'smem constant byte address 0x4 - core index']
  #allocation1 [shape = 'u32[144,128]{1,0:T(1,128)}', space=vmem, size = 0x12000, scoped, tag = 'internal scratch']
  %s0 = inlined_call_operand.vmem [shape: f32[16,32], index: 0, kind: input, shape index: {}]
  %s1 = inlined_call_operand.vmem [shape: f32[32,128], index: 1, kind: input, shape index: {}]
  %s2 = inlined_call_operand.vmem [shape: f32[1,128], index: 2, kind: input, shape index: {}]
  %s3 = inlined_call_operand.hbm [shape: f32[128,128], index: 3, kind: input, shape index: {}]
  %s4 = inlined_call_operand.vmem [shape: f32[1,128], index: 4, kind: input, shape index: {}]
  %s5 = inlined_call_operand.vmem [shape: s32[16,4], index: 5, kind: input, shape index: {}]
  %s6 = inlined_call_operand.vmem [shape: s32[16,4], index: 6, kind: input, shape index: {}]
  %s7 = inlined_call_operand.vmem [shape: f32[16,4], index: 7, kind: input, shape index: {}]
  %s8 = inlined_call_operand.hbm [shape: f32[16,128], index: 8, kind: output, shape index: {}]
  %s9 = sld [smem:[#allocation0]]
  $region46: #{tpu_custom_call.1} parent=0
    _
  %s11 = ssub.s32 1, %s9
  %s12 = scalar_select 0, %s11, %s9
  $region1: #{tpu_custom_call.1} parent=0
    #allocation2 [shape = 'u8[65536]{0}', space=vmem, size = 0x10000, scoped, tag = 'input window, operand 3, single buffered']
    #allocation3 [shape = 's32[1]{0}', space=sflag, size = 0x4, scoped, tag = 'scoped memory for tpu_custom_call.1']
    #allocation4 [shape = 's32[1]{0}', space=sflag, size = 0x4, scoped, tag = 'scoped memory for tpu_custom_call.1']
    #allocation5 [shape = 'u8[8192]{0}', space=vmem, size = 0x2000, scoped, tag = 'output window, operand 0, single buffered']
    %13 = vsyncpa [#allocation3], 0
    %14 = vsyncpa [#allocation4], 0
    // Predicated region
    $region2: #{tpu_custom_call.1} parent=1 // pred_check
      _
    $region3: #{tpu_custom_call.1} parent=1 // pred_check_branch
      %16 = sbr.rel (0) target = $region5
    $region4: #{tpu_custom_call.1} parent=1 // pred_region
      _
    $region5: #{tpu_custom_call.1} parent=1 // pred_fallthru
      _
    // Predicated region
    $region6: #{tpu_custom_call.1} parent=1 // pred_check
      _
    $region7: #{tpu_custom_call.1} parent=1 // pred_check_branch
      %18 = sbr.rel (0) target = $region9
    $region8: #{tpu_custom_call.1} parent=1 // pred_region
      _
    $region9: #{tpu_custom_call.1} parent=1 // pred_fallthru
      _
    // Predicated region
    $region10: #{tpu_custom_call.1} parent=1 // pred_check
      _
    $region11: #{tpu_custom_call.1} parent=1 // pred_check_branch
      %20 = sbr.rel (0) target = $region13
    $region12: #{tpu_custom_call.1} parent=1 // pred_region
      _
    $region13: #{tpu_custom_call.1} parent=1 // pred_fallthru
      _
    // Predicated region
    $region14: #{tpu_custom_call.1} parent=1 // pred_check
      _
    $region15: #{tpu_custom_call.1} parent=1 // pred_check_branch
      %22 = sbr.rel (0) target = $region17
    $region16: #{tpu_custom_call.1} parent=1 // pred_region
      %s24 = ssub.s32 2048, 2048
      %25 = vsyncadd [#allocation3], %s24
      %s26 = sshll.u32 [#allocation2], 4
      %s27 = int_to_ptr.vmem [resolvable:$true] %s26
      %32 = dma.hbm_to_vmem [thread:$0]  %s3, 2048, %s27, [#allocation3], 128, 128, 8
    $region17: #{tpu_custom_call.1} parent=1 // pred_fallthru
      _
    // Predicated region
    $region18: #{tpu_custom_call.1} parent=1 // pred_check
      _
    $region19: #{tpu_custom_call.1} parent=1 // pred_check_branch
      %34 = sbr.rel (0) target = $region21
    $region20: #{tpu_custom_call.1} parent=1 // pred_region
      _
    $region21: #{tpu_custom_call.1} parent=1 // pred_fallthru
      _
    // Predicated region
    $region22: #{tpu_custom_call.1} parent=1 // pred_check
      _
    $region23: #{tpu_custom_call.1} parent=1 // pred_check_branch
      %36 = sbr.rel (0) target = $region25
    $region24: #{tpu_custom_call.1} parent=1 // pred_region
      _
    $region25: #{tpu_custom_call.1} parent=1 // pred_fallthru
      _
    // Predicated region
    $region26: #{tpu_custom_call.1} parent=1 // pred_check
      _
    $region27: #{tpu_custom_call.1} parent=1 // pred_check_branch
      %38 = sbr.rel (0) target = $region29
    $region28: #{tpu_custom_call.1} parent=1 // pred_region
      _
    $region29: #{tpu_custom_call.1} parent=1 // pred_fallthru
      _
    // Predicated region
    $region30: #{tpu_custom_call.1} parent=1 // pred_check
      _
    $region31: #{tpu_custom_call.1} parent=1 // pred_check_branch
      %40 = sbr.rel (0) target = $region33
    $region32: #{tpu_custom_call.1} parent=1 // pred_region
      _
    $region33: #{tpu_custom_call.1} parent=1 // pred_fallthru
      _
    // Predicated region
    $region34: #{tpu_custom_call.1} parent=1 // pred_check
      _
    $region35: #{tpu_custom_call.1} parent=1 // pred_check_branch
      %42 = sbr.rel (0) target = $region37
    $region36: #{tpu_custom_call.1} parent=1 // pred_region
      %43 = dma.done [#allocation3], 2048
    $region37: #{tpu_custom_call.1} parent=1 // pred_fallthru
      _
    %v44 = vld [vmem:[%s0] sm:$0xff]
    %v45 = vld [vmem:[%s0 + $0x8] sm:$0xff]
    %v46 = vld [vmem:[%s1] sm:$0xff]
    %v47 = vld [vmem:[%s1 + $0x8] sm:$0xff]
    %v48 = vld [vmem:[%s1 + $0x10] sm:$0xff]
    %v49 = vld [vmem:[%s1 + $0x18] sm:$0xff]
    %v50 = vld [vmem:[%s2] sm:$0x1]
    %v52 = vlaneseq
    %v53 = vshrl.u32 %v52, 7
    %v54 = vsub.s32 0, %v53
    %v55 = vrot.slane %v50, %v54
    %vm57 = vcmask 261120
    %v59 = vsel %vm57, %v44, 0
    %v62 = vsel %vm57, %v45, 0
    %64 = vmatprep.subr.mxu0 0.0
    %65 = vmatpush1.msra.mxu0 %v46
    %66 = vmatprep.subr.mxu0 0.0
    %67 = vmatpush1.msra.mxu0 %v47
    %68 = vmatprep.subr.mxu0 0.0
    %69 = vmatpush1.msra.mxu0 %v48
    %70 = vmatprep.subr.mxu0 0.0
    %71 = vmatpush1.msra.mxu0 %v49
    %72 = vmatprep.subr.mxu0 0.0
    %73 = vmatpush1.msra.mxu0 0.0
    %74 = vmatprep.subr.mxu0 0.0
    %75 = vmatpush1.msra.mxu0 0.0
    %76 = vmatprep.subr.mxu0 0.0
    %77 = vmatpush1.msra.mxu0 0.0
    %78 = vmatprep.subr.mxu0 0.0
    %79 = vmatpush1.msra.mxu0 0.0
    %80 = vmatprep.subr.mxu0 0.0
    %81 = vmatpush1.msra.mxu0 0.0
    %82 = vmatprep.subr.mxu0 0.0
    %83 = vmatpush1.msra.mxu0 0.0
    %84 = vmatprep.subr.mxu0 0.0
    %85 = vmatpush1.msra.mxu0 0.0
    %86 = vmatprep.subr.mxu0 0.0
    %87 = vmatpush1.msra.mxu0 0.0
    %88 = vmatprep.subr.mxu0 0.0
    %89 = vmatpush1.msra.mxu0 0.0
    %90 = vmatprep.subr.mxu0 0.0
    %91 = vmatpush1.msra.mxu0 0.0
    %92 = vmatprep.subr.mxu0 0.0
    %93 = vmatpush1.msra.mxu0 0.0
    %94 = vmatprep.subr.mxu0 0.0
    %95 = vmatpush1.msra.mxu0 0.0
    %96 = vmatprep.subr.mxu0 0.0
    %97 = vmatpush1.msra.mxu0 0.0
    %98 = vmatprep.subr.mxu0 0.0
    %99 = vmatpush1.msra.mxu0 0.0
    %100 = vmatprep.subr.mxu0 0.0
    %101 = vmatpush1.msra.mxu0 0.0
    %102 = vmatprep.subr.mxu0 0.0
    %103 = vmatpush1.msra.mxu0 0.0
    %104 = vmatprep.subr.mxu0 0.0
    %105 = vmatpush1.msra.mxu0 0.0
    %106 = vmatprep.subr.mxu0 0.0
    %107 = vmatpush1.msra.mxu0 0.0
    %108 = vmatprep.subr.mxu0 0.0
    %109 = vmatpush1.msra.mxu0 0.0
    %110 = vmatprep.subr.mxu0 0.0
    %111 = vmatpush1.msra.mxu0 0.0
    %112 = vmatprep.subr.mxu0 0.0
    %113 = vmatpush1.msra.mxu0 0.0
    %114 = vmatprep.subr.mxu0 0.0
    %115 = vmatpush1.msra.mxu0 0.0
    %116 = vmatprep.subr.mxu0 0.0
    %117 = vmatpush1.msra.mxu0 0.0
    %118 = vmatprep.subr.mxu0 0.0
    %119 = vmatpush1.msra.mxu0 0.0
    %120 = vmatprep.subr.mxu0 0.0
    %121 = vmatpush1.msra.mxu0 0.0
    %122 = vmatprep.subr.mxu0 0.0
    %123 = vmatpush1.msra.mxu0 0.0
    %124 = vmatprep.subr.mxu0 0.0
    %125 = vmatpush1.msra.mxu0 0.0
    %126 = vmatprep.subr.mxu0 0.0
    %127 = vmatpush1.msra.mxu0 0.0
    %128 = vmatprep.mubr.f32.mxu0 0.0
    %129 = vmatmul.mubr.f32.gmra.mrb[0].mxu0 %v59
    %v130 = vpop.f32.mrb[0].mxu0
    %v131 = vadd.f32 %v55, %v130
    %v132 = vpop.f32.mrb[0].mxu0
    %133 = vmatprep.mubr.f32.mxu0 0.0
    %134 = vmatmul.mubr.f32.gmra.mrb[0].mxu0 %v62
    %v135 = vpop.f32.mrb[0].mxu0
    %v136 = vadd.f32 %v55, %v135
    %v137 = vpop.f32.mrb[0].mxu0
    %138 = vdwg.mxu0
    %v139 = vmax.f32 %v131, 0.0
    %v140 = vmax.f32 %v136, 0.0
    %v141 = vld [vmem:[#allocation2] sm:$0xff]
    %v142 = vld [vmem:[#allocation2 + $0x8] sm:$0xff]
    %v143 = vld [vmem:[#allocation2 + $0x10] sm:$0xff]
    %v144 = vld [vmem:[#allocation2 + $0x18] sm:$0xff]
    %v145 = vld [vmem:[#allocation2 + $0x20] sm:$0xff]
    %v146 = vld [vmem:[#allocation2 + $0x28] sm:$0xff]
    %v147 = vld [vmem:[#allocation2 + $0x30] sm:$0xff]
    %v148 = vld [vmem:[#allocation2 + $0x38] sm:$0xff]
    %v149 = vld [vmem:[#allocation2 + $0x40] sm:$0xff]
    %v150 = vld [vmem:[#allocation2 + $0x48] sm:$0xff]
    %v151 = vld [vmem:[#allocation2 + $0x50] sm:$0xff]
    %v152 = vld [vmem:[#allocation2 + $0x58] sm:$0xff]
    %v153 = vld [vmem:[#allocation2 + $0x60] sm:$0xff]
    %v154 = vld [vmem:[#allocation2 + $0x68] sm:$0xff]
    %v155 = vld [vmem:[#allocation2 + $0x70] sm:$0xff]
    %v156 = vld [vmem:[#allocation2 + $0x78] sm:$0xff]
    %v157 = vld [vmem:[%s4] sm:$0x1]
    %v159 = vlaneseq
    %v160 = vshrl.u32 %v159, 7
    %v161 = vsub.s32 0, %v160
    %v162 = vrot.slane %v157, %v161
    %164 = vmatprep.subr.mxu0 0.0
    %165 = vmatpush1.msra.mxu0 %v141
    %166 = vmatprep.subr.mxu0 0.0
    %167 = vmatpush1.msra.mxu0 %v142
    %168 = vmatprep.subr.mxu0 0.0
    %169 = vmatpush1.msra.mxu0 %v143
    %170 = vmatprep.subr.mxu0 0.0
    %171 = vmatpush1.msra.mxu0 %v144
    %172 = vmatprep.subr.mxu0 0.0
    %173 = vmatpush1.msra.mxu0 %v145
    %174 = vmatprep.subr.mxu0 0.0
    %175 = vmatpush1.msra.mxu0 %v146
    %176 = vmatprep.subr.mxu0 0.0
    %177 = vmatpush1.msra.mxu0 %v147
    %178 = vmatprep.subr.mxu0 0.0
    %179 = vmatpush1.msra.mxu0 %v148
    %180 = vmatprep.subr.mxu0 0.0
    %181 = vmatpush1.msra.mxu0 %v149
    %182 = vmatprep.subr.mxu0 0.0
    %183 = vmatpush1.msra.mxu0 %v150
    %184 = vmatprep.subr.mxu0 0.0
    %185 = vmatpush1.msra.mxu0 %v151
    %186 = vmatprep.subr.mxu0 0.0
    %187 = vmatpush1.msra.mxu0 %v152
    %188 = vmatprep.subr.mxu0 0.0
    %189 = vmatpush1.msra.mxu0 %v153
    %190 = vmatprep.subr.mxu0 0.0
    %191 = vmatpush1.msra.mxu0 %v154
    %192 = vmatprep.subr.mxu0 0.0
    %193 = vmatpush1.msra.mxu0 %v155
    %194 = vmatprep.subr.mxu0 0.0
    %195 = vmatpush1.msra.mxu0 %v156
    %196 = vmatprep.subr.mxu0 0.0
    %197 = vmatpush1.msra.mxu0 0.0
    %198 = vmatprep.subr.mxu0 0.0
    %199 = vmatpush1.msra.mxu0 0.0
    %200 = vmatprep.subr.mxu0 0.0
    %201 = vmatpush1.msra.mxu0 0.0
    %202 = vmatprep.subr.mxu0 0.0
    %203 = vmatpush1.msra.mxu0 0.0
    %204 = vmatprep.subr.mxu0 0.0
    %205 = vmatpush1.msra.mxu0 0.0
    %206 = vmatprep.subr.mxu0 0.0
    %207 = vmatpush1.msra.mxu0 0.0
    %208 = vmatprep.subr.mxu0 0.0
    %209 = vmatpush1.msra.mxu0 0.0
    %210 = vmatprep.subr.mxu0 0.0
    %211 = vmatpush1.msra.mxu0 0.0
    %212 = vmatprep.subr.mxu0 0.0
    %213 = vmatpush1.msra.mxu0 0.0
    %214 = vmatprep.subr.mxu0 0.0
    %215 = vmatpush1.msra.mxu0 0.0
    %216 = vmatprep.subr.mxu0 0.0
    %217 = vmatpush1.msra.mxu0 0.0
    %218 = vmatprep.subr.mxu0 0.0
    %219 = vmatpush1.msra.mxu0 0.0
    %220 = vmatprep.subr.mxu0 0.0
    %221 = vmatpush1.msra.mxu0 0.0
    %222 = vmatprep.subr.mxu0 0.0
    %223 = vmatpush1.msra.mxu0 0.0
    %224 = vmatprep.subr.mxu0 0.0
    %225 = vmatpush1.msra.mxu0 0.0
    %226 = vmatprep.subr.mxu0 0.0
    %227 = vmatpush1.msra.mxu0 0.0
    %228 = vmatprep.mubr.f32.mxu0 0.0
    %229 = vmatmul.mubr.f32.gmra.mrb[0].mxu0 %v139
    %v230 = vpop.f32.mrb[0].mxu0
    %v231 = vadd.f32 %v162, %v230
    %v232 = vpop.f32.mrb[0].mxu0
    %233 = vmatprep.mubr.f32.mxu0 0.0
    %234 = vmatmul.mubr.f32.gmra.mrb[0].mxu0 %v140
    %v235 = vpop.f32.mrb[0].mxu0
    %v236 = vadd.f32 %v162, %v235
    %v237 = vpop.f32.mrb[0].mxu0
    %238 = vdwg.mxu0
    %v239 = vld [vmem:[%s5] sm:$0xff]
    %v240 = vld [vmem:[%s5 + $0x8] sm:$0xff]
    %v241 = vld [vmem:[%s6] sm:$0xff]
    %v242 = vld [vmem:[%s6 + $0x8] sm:$0xff]
    %v243 = vld [vmem:[%s7] sm:$0xff]
    %v244 = vld [vmem:[%s7 + $0x8] sm:$0xff]
    %v245 = vlaneseq
    %v246 = vand.u32 %v245, 127
    %247 = vset.pattern.permute.xlu0 0
    %248 = vperm.xlu0 %247, %v239
    %v249 = vpop.permute.xlu0 %248
    %250 = vset.pattern.permute.xlu0 0
    %251 = vperm.xlu0 %250, %v240
    %v252 = vpop.permute.xlu0 %251
    %vm253 = vcmp.eq.s32.totalorder %v246, %v249
    %vm254 = vcmp.eq.s32.totalorder %v246, %v252
    %v255 = vsel %vm253, %v231, 0.0
    %v256 = vsel %vm254, %v236, 0.0
    %257 = vadd.xlane.f32.xlu0 %v255
    %v258 = vpop.xlane.xlu0 %257
    %259 = vadd.xlane.f32.xlu0 %v256
    %v260 = vpop.xlane.xlu0 %259
    %v261 = vxor.u32 %v258, 2147483648
    %v262 = vxor.u32 %v260, 2147483648
    %v263 = vmul.f32 %v261, 1.442695
    %v264 = vpow.pop %v263
    %v265 = vmul.f32 %v262, 1.442695
    %v266 = vpow.pop %v265
    %v267 = vadd.f32 %v264, 1.0
    %v268 = vadd.f32 %v266, 1.0
    %v269 = vrcp.pop %v267
    %v270 = vmul.f32 1.0, %v269
    %v271 = vrcp.pop %v268
    %v272 = vmul.f32 1.0, %v271
    %vm273 = vcmp.gt.f32.partialorder %v243, 0.0
    %vm274 = vcmp.gt.f32.partialorder %v244, 0.0
    %v275 = vsel %vm273, 1, 0
    %v276 = vsel %vm274, 1, 0
    %v277 = vcvt.s32.f32 %v275
    %v278 = vcvt.s32.f32 %v276
    %v279 = vmul.f32 %v270, %v243
    %v280 = vmul.f32 %v272, %v244
    %281 = vset.pattern.permute.xlu0 0
    %282 = vperm.xlu0 %281, %v241
    %v283 = vpop.permute.xlu0 %282
    %284 = vset.pattern.permute.xlu0 0
    %285 = vperm.xlu0 %284, %v242
    %v286 = vpop.permute.xlu0 %285
    %vm287 = vcmp.eq.s32.totalorder %v246, %v283
    %vm288 = vcmp.eq.s32.totalorder %v246, %v286
    %v289 = vsel %vm287, 1, 0
    %v290 = vsel %vm288, 1, 0
    %v291 = vcvt.s32.f32 %v289
    %v292 = vcvt.s32.f32 %v290
    %294 = vset.pattern.permute.xlu0 0
    %295 = vperm.xlu0 %294, %v279
    %v296 = vpop.permute.xlu0 %295
    %299 = vset.pattern.permute.xlu0 0
    %300 = vperm.xlu0 %299, %v280
    %v301 = vpop.permute.xlu0 %300
    %v303 = vmul.f32 %v296, %v291
    %v304 = vmul.f32 %v301, %v292
    %v305 = vadd.f32 %v303, 0.0
    %v306 = vadd.f32 %v304, 0.0
    %vm307 = vcmp.eq.s32.totalorder %v246, 3
    %v308 = vsel %vm307, 1, 0
    %v309 = vcvt.s32.f32 %v308
    %v310 = vmul.f32 %v270, %v309
    %v311 = vmul.f32 %v272, %v309
    %v312 = vadd.f32 %v310, 0.0
    %v313 = vadd.f32 %v311, 0.0
    %v314 = vadd.f32 %v243, 0.0
    %v315 = vadd.f32 %v244, 0.0
    %v316 = vmul.f32 %v270, %v277
    %v317 = vmul.f32 %v272, %v278
    %v318 = vadd.f32 %v316, 0.0
    %v319 = vadd.f32 %v317, 0.0
    %320 = vset.pattern.permute.xlu0 1
    %321 = vperm.xlu0 %320, %v239
    %v322 = vpop.permute.xlu0 %321
    %323 = vset.pattern.permute.xlu0 1
    %324 = vperm.xlu0 %323, %v240
    %v325 = vpop.permute.xlu0 %324
    %vm326 = vcmp.eq.s32.totalorder %v246, %v322
    %vm327 = vcmp.eq.s32.totalorder %v246, %v325
    %v328 = vsel %vm326, %v231, 0.0
    %v329 = vsel %vm327, %v236, 0.0
    %330 = vadd.xlane.f32.xlu0 %v328
    %v331 = vpop.xlane.xlu0 %330
    %332 = vadd.xlane.f32.xlu0 %v329
    %v333 = vpop.xlane.xlu0 %332
    %v334 = vxor.u32 %v331, 2147483648
    %v335 = vxor.u32 %v333, 2147483648
    %v336 = vmul.f32 %v334, 1.442695
    %v337 = vpow.pop %v336
    %v338 = vmul.f32 %v335, 1.442695
    %v339 = vpow.pop %v338
    %v340 = vadd.f32 %v337, 1.0
    %v341 = vadd.f32 %v339, 1.0
    %v342 = vrcp.pop %v340
    %v343 = vmul.f32 1.0, %v342
    %v344 = vrcp.pop %v341
    %v345 = vmul.f32 1.0, %v344
    %v346 = vmul.f32 %v343, %v243
    %v347 = vmul.f32 %v345, %v244
    %348 = vset.pattern.permute.xlu0 1
    %349 = vperm.xlu0 %348, %v241
    %v350 = vpop.permute.xlu0 %349
    %351 = vset.pattern.permute.xlu0 1
    %352 = vperm.xlu0 %351, %v242
    %v353 = vpop.permute.xlu0 %352
    %vm354 = vcmp.eq.s32.totalorder %v246, %v350
    %vm355 = vcmp.eq.s32.totalorder %v246, %v353
    %v356 = vsel %vm354, 1, 0
    %v357 = vsel %vm355, 1, 0
    %v358 = vcvt.s32.f32 %v356
    %v359 = vcvt.s32.f32 %v357
    %361 = vset.pattern.permute.xlu0 1
    %362 = vperm.xlu0 %361, %v346
    %v363 = vpop.permute.xlu0 %362
    %366 = vset.pattern.permute.xlu0 1
    %367 = vperm.xlu0 %366, %v347
    %v368 = vpop.permute.xlu0 %367
    %v370 = vmul.f32 %v363, %v358
    %v371 = vmul.f32 %v368, %v359
    %v372 = vadd.f32 %v305, %v370
    %v373 = vadd.f32 %v306, %v371
    %vm374 = vcmp.eq.s32.totalorder %v246, 4
    %v375 = vsel %vm374, 1, 0
    %v376 = vcvt.s32.f32 %v375
    %v377 = vmul.f32 %v343, %v376
    %v378 = vmul.f32 %v345, %v376
    %v379 = vadd.f32 %v312, %v377
    %v380 = vadd.f32 %v313, %v378
    %383 = vrot.lane.b32.xlu0 %v243, 127
    %v384 = vpop.permute.xlu0 %383
    %385 = vrot.lane.b32.xlu0 %v244, 127
    %v386 = vpop.permute.xlu0 %385
    %v389 = vadd.f32 %v314, %v384
    %v390 = vadd.f32 %v315, %v386
    %v391 = vmul.f32 %v343, %v277
    %v392 = vmul.f32 %v345, %v278
    %395 = vrot.lane.b32.xlu0 %v391, 127
    %v396 = vpop.permute.xlu0 %395
    %397 = vrot.lane.b32.xlu0 %v392, 127
    %v398 = vpop.permute.xlu0 %397
    %v401 = vadd.f32 %v318, %v396
    %v402 = vadd.f32 %v319, %v398
    %403 = vset.pattern.permute.xlu0 2
    %404 = vperm.xlu0 %403, %v239
    %v405 = vpop.permute.xlu0 %404
    %406 = vset.pattern.permute.xlu0 2
    %407 = vperm.xlu0 %406, %v240
    %v408 = vpop.permute.xlu0 %407
    %vm409 = vcmp.eq.s32.totalorder %v246, %v405
    %vm410 = vcmp.eq.s32.totalorder %v246, %v408
    %v411 = vsel %vm409, %v231, 0.0
    %v412 = vsel %vm410, %v236, 0.0
    %413 = vadd.xlane.f32.xlu0 %v411
    %v414 = vpop.xlane.xlu0 %413
    %415 = vadd.xlane.f32.xlu0 %v412
    %v416 = vpop.xlane.xlu0 %415
    %v417 = vxor.u32 %v414, 2147483648
    %v418 = vxor.u32 %v416, 2147483648
    %v419 = vmul.f32 %v417, 1.442695
    %v420 = vpow.pop %v419
    %v421 = vmul.f32 %v418, 1.442695
    %v422 = vpow.pop %v421
    %v423 = vadd.f32 %v420, 1.0
    %v424 = vadd.f32 %v422, 1.0
    %v425 = vrcp.pop %v423
    %v426 = vmul.f32 1.0, %v425
    %v427 = vrcp.pop %v424
    %v428 = vmul.f32 1.0, %v427
    %v429 = vmul.f32 %v426, %v243
    %v430 = vmul.f32 %v428, %v244
    %431 = vset.pattern.permute.xlu0 2
    %432 = vperm.xlu0 %431, %v241
    %v433 = vpop.permute.xlu0 %432
    %434 = vset.pattern.permute.xlu0 2
    %435 = vperm.xlu0 %434, %v242
    %v436 = vpop.permute.xlu0 %435
    %vm437 = vcmp.eq.s32.totalorder %v246, %v433
    %vm438 = vcmp.eq.s32.totalorder %v246, %v436
    %v439 = vsel %vm437, 1, 0
    %v440 = vsel %vm438, 1, 0
    %v441 = vcvt.s32.f32 %v439
    %v442 = vcvt.s32.f32 %v440
    %444 = vset.pattern.permute.xlu0 2
    %445 = vperm.xlu0 %444, %v429
    %v446 = vpop.permute.xlu0 %445
    %449 = vset.pattern.permute.xlu0 2
    %450 = vperm.xlu0 %449, %v430
    %v451 = vpop.permute.xlu0 %450
    %v453 = vmul.f32 %v446, %v441
    %v454 = vmul.f32 %v451, %v442
    %v455 = vadd.f32 %v372, %v453
    %v456 = vadd.f32 %v373, %v454
    %vm457 = vcmp.eq.s32.totalorder %v246, 5
    %v458 = vsel %vm457, 1, 0
    %v459 = vcvt.s32.f32 %v458
    %v460 = vmul.f32 %v426, %v459
    %v461 = vmul.f32 %v428, %v459
    %v462 = vadd.f32 %v379, %v460
    %v463 = vadd.f32 %v380, %v461
    %464 = vrot.lane.b32.xlu0 %v243, 126
    %v465 = vpop.permute.xlu0 %464
    %466 = vrot.lane.b32.xlu0 %v244, 126
    %v467 = vpop.permute.xlu0 %466
    %v470 = vadd.f32 %v389, %v465
    %v471 = vadd.f32 %v390, %v467
    %v472 = vmul.f32 %v426, %v277
    %v473 = vmul.f32 %v428, %v278
    %476 = vrot.lane.b32.xlu0 %v472, 126
    %v477 = vpop.permute.xlu0 %476
    %478 = vrot.lane.b32.xlu0 %v473, 126
    %v479 = vpop.permute.xlu0 %478
    %v482 = vadd.f32 %v401, %v477
    %v483 = vadd.f32 %v402, %v479
    %484 = vset.pattern.permute.xlu0 3
    %485 = vperm.xlu0 %484, %v239
    %v486 = vpop.permute.xlu0 %485
    %487 = vset.pattern.permute.xlu0 3
    %488 = vperm.xlu0 %487, %v240
    %v489 = vpop.permute.xlu0 %488
    %vm490 = vcmp.eq.s32.totalorder %v246, %v486
    %vm491 = vcmp.eq.s32.totalorder %v246, %v489
    %v492 = vsel %vm490, %v231, 0.0
    %v493 = vsel %vm491, %v236, 0.0
    %494 = vadd.xlane.f32.xlu0 %v492
    %v495 = vpop.xlane.xlu0 %494
    %496 = vadd.xlane.f32.xlu0 %v493
    %v497 = vpop.xlane.xlu0 %496
    %v498 = vxor.u32 %v495, 2147483648
    %v499 = vxor.u32 %v497, 2147483648
    %v500 = vmul.f32 %v498, 1.442695
    %v501 = vpow.pop %v500
    %v502 = vmul.f32 %v499, 1.442695
    %v503 = vpow.pop %v502
    %v504 = vadd.f32 %v501, 1.0
    %v505 = vadd.f32 %v503, 1.0
    %v506 = vrcp.pop %v504
    %v507 = vmul.f32 1.0, %v506
    %v508 = vrcp.pop %v505
    %v509 = vmul.f32 1.0, %v508
    %v510 = vmul.f32 %v507, %v243
    %v511 = vmul.f32 %v509, %v244
    %512 = vset.pattern.permute.xlu0 3
    %513 = vperm.xlu0 %512, %v241
    %v514 = vpop.permute.xlu0 %513
    %515 = vset.pattern.permute.xlu0 3
    %516 = vperm.xlu0 %515, %v242
    %v517 = vpop.permute.xlu0 %516
    %vm518 = vcmp.eq.s32.totalorder %v246, %v514
    %vm519 = vcmp.eq.s32.totalorder %v246, %v517
    %v520 = vsel %vm518, 1, 0
    %v521 = vsel %vm519, 1, 0
    %v522 = vcvt.s32.f32 %v520
    %v523 = vcvt.s32.f32 %v521
    %525 = vset.pattern.permute.xlu0 3
    %526 = vperm.xlu0 %525, %v510
    %v527 = vpop.permute.xlu0 %526
    %530 = vset.pattern.permute.xlu0 3
    %531 = vperm.xlu0 %530, %v511
    %v532 = vpop.permute.xlu0 %531
    %v534 = vmul.f32 %v527, %v522
    %v535 = vmul.f32 %v532, %v523
    %v536 = vadd.f32 %v455, %v534
    %v537 = vadd.f32 %v456, %v535
    %vm538 = vcmp.eq.s32.totalorder %v246, 6
    %v539 = vsel %vm538, 1, 0
    %v540 = vcvt.s32.f32 %v539
    %v541 = vmul.f32 %v507, %v540
    %v542 = vmul.f32 %v509, %v540
    %v543 = vadd.f32 %v462, %v541
    %v544 = vadd.f32 %v463, %v542
    %545 = vrot.lane.b32.xlu0 %v243, 125
    %v546 = vpop.permute.xlu0 %545
    %547 = vrot.lane.b32.xlu0 %v244, 125
    %v548 = vpop.permute.xlu0 %547
    %v551 = vadd.f32 %v470, %v546
    %v552 = vadd.f32 %v471, %v548
    %v553 = vmul.f32 %v507, %v277
    %v554 = vmul.f32 %v509, %v278
    %557 = vrot.lane.b32.xlu0 %v553, 125
    %v558 = vpop.permute.xlu0 %557
    %559 = vrot.lane.b32.xlu0 %v554, 125
    %v560 = vpop.permute.xlu0 %559
    %v563 = vadd.f32 %v482, %v558
    %v564 = vadd.f32 %v483, %v560
    %vm565 = vcmp.lt.s32.totalorder %v246, 3
    %v566 = vsel %vm565, 1, 0
    %v567 = vcvt.s32.f32 %v566
    %v568 = vsub.f32 %v551, %v563
    %v569 = vsub.f32 %v552, %v564
    %v570 = vmul.f32 %v568, 0.33333334
    %v571 = vmul.f32 %v569, 0.33333334
    %573 = vset.pattern.permute.xlu0 0
    %574 = vperm.xlu0 %573, %v570
    %v575 = vpop.permute.xlu0 %574
    %578 = vset.pattern.permute.xlu0 0
    %579 = vperm.xlu0 %578, %v571
    %v580 = vpop.permute.xlu0 %579
    %v582 = vmul.f32 %v575, %v567
    %v583 = vmul.f32 %v580, %v567
    %v584 = vadd.f32 %v536, %v582
    %v585 = vadd.f32 %v537, %v583
    %v586 = vmul.f32 %v567, 1e-05
    %v587 = vadd.f32 %v584, %v586
    %v588 = vadd.f32 %v585, %v586
    %589 = vadd.xlane.f32.xlu0 %v587
    %v590 = vpop.xlane.xlu0 %589
    %591 = vadd.xlane.f32.xlu0 %v588
    %v592 = vpop.xlane.xlu0 %591
    %v593 = vrcp.pop %v590
    %v594 = vrcp.pop %v592
    %v595 = vmul.f32 %v587, %v593
    %v596 = vmul.f32 %v588, %v594
    %v597 = vadd.f32 %v595, %v543
    %v598 = vadd.f32 %v596, %v544
    %599 = vst [vmem:[#allocation5] sm:$0xff] %v597
    %600 = vst [vmem:[#allocation5 + $0x8] sm:$0xff] %v598
    // Predicated region
    $region38: #{tpu_custom_call.1} parent=1 // pred_check
      _
    $region39: #{tpu_custom_call.1} parent=1 // pred_check_branch
      %602 = sbr.rel (0) target = $region41
    $region40: #{tpu_custom_call.1} parent=1 // pred_region
      %s604 = ssub.s32 256, 256
      %605 = vsyncadd [#allocation4], %s604
      %s606 = sshll.u32 [#allocation5], 4
      %s607 = int_to_ptr.vmem [resolvable:$true] %s606
      %612 = dma.vmem_to_hbm [thread:$0]  %s607, 256, %s8, [#allocation4], 128, 128, 8
    $region41: #{tpu_custom_call.1} parent=1 // pred_fallthru
      _
    // Predicated region
    $region42: #{tpu_custom_call.1} parent=1 // pred_check
      _
    $region43: #{tpu_custom_call.1} parent=1 // pred_check_branch
      %614 = sbr.rel (0) target = $region45
    $region44: #{tpu_custom_call.1} parent=1 // pred_region
      %615 = dma.done [#allocation4], 256
    $region45: #{tpu_custom_call.1} parent=1 // pred_fallthru
      _
    %616 = vsyncpa [#allocation3], 1
    %617 = vsyncpa [#allocation4], 1

</llo_original>
